<compile_context>
chip_gen: v7x
topology: tpu7x:2x2x1
jax: 0.10.0
libtpu: 0.0.40
codegen_flags: <defaults>
</compile_context>

<pallas_src>
import jax
import jax.numpy as jnp
from jax.experimental import pallas as pl
from jax.experimental.pallas import tpu as pltpu


def _round_up(n, m):
    return ((n + m - 1) // m) * m


def _mvpc_kernel(x_ref, w_in_ref, b_in_ref, w_emb_ref, b_emb_ref,
                 w_out_ref, b_out_ref, o_ref):
    # x arrives f32 (no extra wrapper-side HBM cast pass); cast on the VPU
    # right before the MXU push.  All weights are resident bf16, all bias /
    # ReLU math is f32.
    x_bf = x_ref[...].astype(jnp.bfloat16)                         # [tbp, P*F]
    h1 = jnp.dot(x_bf, w_in_ref[...],
                 preferred_element_type=jnp.float32)               # [tbp, P*nf]
    h1 = jnp.maximum(h1 + b_in_ref[...], 0.0)
    h2 = jnp.dot(h1.astype(jnp.bfloat16), w_emb_ref[...],
                 preferred_element_type=jnp.float32)               # [tbp, P*H]
    h2 = jnp.maximum(h2 + b_emb_ref[...], 0.0)
    y = jnp.dot(h2.astype(jnp.bfloat16), w_out_ref[...],
                preferred_element_type=jnp.float32)                # [tbp, P]
    o_ref[...] = y + b_out_ref[...]


def multi_value_pattern_classifier(x, params, *, tile_b=16384):
    """x: [B, F] float32. Returns [B] float32 (matches torch forward)."""
    w_in, b_in, w_emb, b_emb, w_out, b_out = params
    B, F = x.shape
    nf = w_in.shape[1]
    H = w_emb.shape[1]

    # Lane-packing factor: P logical rows per physical row -> P*F lanes
    # (exactly 128 when F=16).
    P = max(1, min(8, 128 // max(F, 1)))

    # Packed batch-tile rows: multiple of 16 (f32 (8,128) x tile + bf16
    # (16,128) intermediates), derived from the requested logical tile_b.
    tbp = max(16, _round_up(min(tile_b, _round_up(B, P)) // P, 16))
    tb = tbp * P                       # logical rows per grid step
    Bp = _round_up(B, tb)
    if Bp != B:
        x = jnp.pad(x, ((0, Bp - B), (0, 0)))

    # --- wrapper-side layout plumbing (tiny, one-off) ---
    x_packed = x.reshape(Bp // P, P * F)                  # metadata-only reshape
    eye_p = jnp.eye(P, dtype=jnp.float32)
    w_in_p = jnp.kron(eye_p, w_in).astype(jnp.bfloat16)   # [P*F, P*nf]
    b_in_p = jnp.tile(b_in, (1, P))                       # [1, P*nf]  f32
    w_emb_p = jnp.kron(eye_p, w_emb).astype(jnp.bfloat16)  # [P*nf, P*H]
    b_emb_p = jnp.tile(b_emb, (1, P))                     # [1, P*H]   f32
    w_out_p = jnp.kron(eye_p, w_out).astype(jnp.bfloat16)  # [P*H, P]
    b_out_p = jnp.tile(b_out, (1, P))                     # [1, P]     f32

    grid = (Bp // tb,)
    out = pl.pallas_call(
        _mvpc_kernel,
        out_shape=jax.ShapeDtypeStruct((Bp // P, P), jnp.float32),
        grid=grid,
        in_specs=[
            # x: streamed per batch tile (double-buffer pipelined)
            pl.BlockSpec((tbp, P * F), lambda i: (i, 0)),
            # params: full-array blocks, resident in VMEM across tiles
            pl.BlockSpec((P * F, P * nf), lambda i: (0, 0)),
            pl.BlockSpec((1, P * nf), lambda i: (0, 0)),
            pl.BlockSpec((P * nf, P * H), lambda i: (0, 0)),
            pl.BlockSpec((1, P * H), lambda i: (0, 0)),
            pl.BlockSpec((P * H, P), lambda i: (0, 0)),
            pl.BlockSpec((1, P), lambda i: (0, 0)),
        ],
        out_specs=pl.BlockSpec((tbp, P), lambda i: (i, 0)),
        compiler_params=pltpu.CompilerParams(
            dimension_semantics=("parallel",),
            vmem_limit_bytes=48 * 1024 * 1024,   # <= v7x 64 MiB; > v5e/v6e defaults
        ),
    )(x_packed, w_in_p, b_in_p, w_emb_p, b_emb_p, w_out_p, b_out_p)

    # Unpack [Bp/P, P] -> [Bp], drop padding (the torch squeeze(dim=-1)).
    return out.reshape(Bp)[:B]


def make_params(key, feat_size_list, dim_hidden):
    """Deterministic parameter init mirroring the torch module's shapes.

    input_linears[i]: Linear(feat_size_list[i], 1)  -> fused into block-diag W_in
    embedding:        Linear(num_feature, dim_hidden)
    output_layer:     Linear(dim_hidden, 1)
    """
    num_feature = len(feat_size_list)
    total_feat = sum(feat_size_list)
    keys = jax.random.split(key, 2 * num_feature + 4)

    w_in = jnp.zeros((total_feat, num_feature), jnp.float32)
    b_in = jnp.zeros((1, num_feature), jnp.float32)
    pos = 0
    for i, fs in enumerate(feat_size_list):
        wi = 0.1 * jax.random.normal(keys[2 * i], (fs,), jnp.float32)
        bi = 0.1 * jax.random.normal(keys[2 * i + 1], (), jnp.float32)
        w_in = w_in.at[pos:pos + fs, i].set(wi)
        b_in = b_in.at[0, i].set(bi)
        pos += fs

    w_emb = 0.1 * jax.random.normal(keys[-4], (num_feature, dim_hidden), jnp.float32)
    b_emb = 0.1 * jax.random.normal(keys[-3], (1, dim_hidden), jnp.float32)
    w_out = 0.1 * jax.random.normal(keys[-2], (dim_hidden, 1), jnp.float32)
    b_out = 0.1 * jax.random.normal(keys[-1], (1, 1), jnp.float32)
    return (w_in, b_in, w_emb, b_emb, w_out, b_out)


def reference_forward(x, params, feat_size_list):
    """Plain-JAX f32 replica of the torch forward (per-feature slicing)."""
    w_in, b_in, w_emb, b_emb, w_out, b_out = params
    feats = []
    pos = 0
    for i, fs in enumerate(feat_size_list):
        xi = x[:, pos:pos + fs]
        yi = xi @ w_in[pos:pos + fs, i:i + 1] + b_in[0, i]
        feats.append(jnp.maximum(yi, 0.0))
        pos += fs
    h = jnp.concatenate(feats, axis=-1)
    h = jnp.maximum(h @ w_emb + b_emb, 0.0)
    return (h @ w_out + b_out)[:, 0]


if __name__ == "__main__":
    feat_size_list = [4, 3, 5, 4]          # total input features = 16
    dim_hidden = 32
    batch = 300                            # non-multiple of tile -> exercises padding

    key = jax.random.PRNGKey(0)
    kx, kp = jax.random.split(key)
    x = jax.random.normal(kx, (batch, sum(feat_size_list)), jnp.float32)
    params = make_params(kp, feat_size_list, dim_hidden)

    # tile_b=128 at this small batch -> 3-tile grid (tbp=16 packed rows/tile)
    # exercises the pipeline and the padded-tail path.
    y = multi_value_pattern_classifier(x, params, tile_b=128)
    y = jax.block_until_ready(y)

    y_ref = reference_forward(x, params, feat_size_list)
    assert y.shape == (batch,)
    # Tolerance accounts for bf16 MXU operands on all three layers
    # (x~N(0,1), w~0.1): observed error is O(1e-3); 2e-2 is comfortably safe.
    max_err = float(jnp.max(jnp.abs(y - y_ref)))
    assert jnp.allclose(y, y_ref, atol=2e-2, rtol=2e-2), max_err

    print("KERNEL_OK")
</pallas_src>

<mosaic_0001>
module attributes {stable_mosaic.version = 11 : i64} {
  func.func @_mvpc_kernel(%arg0: i32, %arg1: memref<16x128xf32, #tpu.memory_space<vmem>>, %arg2: memref<128x32xbf16, #tpu.memory_space<vmem>>, %arg3: memref<1x32xf32, #tpu.memory_space<vmem>>, %arg4: memref<32x256xbf16, #tpu.memory_space<vmem>>, %arg5: memref<1x256xf32, #tpu.memory_space<vmem>>, %arg6: memref<256x8xbf16, #tpu.memory_space<vmem>>, %arg7: memref<1x8xf32, #tpu.memory_space<vmem>>, %arg8: memref<16x8xf32, #tpu.memory_space<vmem>>) attributes {dimension_semantics = [#tpu.dimension_semantics<parallel>], iteration_bounds = array<i64: 3>, scalar_prefetch = 0 : i64, scratch_operands = 0 : i64, tpu.core_type = #tpu.core_type<tc>, window_params = [{transform_indices = @transform_0, window_bounds = array<i64: 16, 128>}, {pipeline_mode = #tpu.pipeline_mode<synchronous>, transform_indices = @transform_1, window_bounds = array<i64: 128, 32>}, {pipeline_mode = #tpu.pipeline_mode<synchronous>, transform_indices = @transform_2, window_bounds = array<i64: 1, 32>}, {pipeline_mode = #tpu.pipeline_mode<synchronous>, transform_indices = @transform_3, window_bounds = array<i64: 32, 256>}, {pipeline_mode = #tpu.pipeline_mode<synchronous>, transform_indices = @transform_4, window_bounds = array<i64: 1, 256>}, {pipeline_mode = #tpu.pipeline_mode<synchronous>, transform_indices = @transform_5, window_bounds = array<i64: 256, 8>}, {pipeline_mode = #tpu.pipeline_mode<synchronous>, transform_indices = @transform_6, window_bounds = array<i64: 1, 8>}, {transform_indices = @transform_7, window_bounds = array<i64: 16, 8>}]} {
    %c0 = arith.constant 0 : index
    %c0_0 = arith.constant 0 : index
    %0 = vector.load %arg1[%c0, %c0_0] : memref<16x128xf32, #tpu.memory_space<vmem>>, vector<16x128xf32>
    %1 = arith.truncf %0 : vector<16x128xf32> to vector<16x128xbf16>
    %c0_1 = arith.constant 0 : index
    %c0_2 = arith.constant 0 : index
    %2 = vector.load %arg2[%c0_1, %c0_2] : memref<128x32xbf16, #tpu.memory_space<vmem>>, vector<128x32xbf16>
    %cst = arith.constant dense<0.000000e+00> : vector<16x32xf32>
    %3 = tpu.matmul %1, %2, %cst {dimension_numbers = #tpu.dot_dimension_numbers<[1], [0], [0], [1], [0, 0, 1, 1], [], []>} : vector<16x128xbf16>, vector<128x32xbf16>, vector<16x32xf32> -> vector<16x32xf32>
    %c0_3 = arith.constant 0 : index
    %c0_4 = arith.constant 0 : index
    %4 = vector.load %arg3[%c0_3, %c0_4] : memref<1x32xf32, #tpu.memory_space<vmem>>, vector<1x32xf32>
    %5 = vector.broadcast %4 : vector<1x32xf32> to vector<16x32xf32>
    %6 = arith.addf %3, %5 : vector<16x32xf32>
    %cst_5 = arith.constant 0.000000e+00 : f32
    %7 = vector.broadcast %cst_5 : f32 to vector<16x32xf32>
    %8 = arith.maximumf %6, %7 : vector<16x32xf32>
    %9 = arith.truncf %8 : vector<16x32xf32> to vector<16x32xbf16>
    %c0_6 = arith.constant 0 : index
    %c0_7 = arith.constant 0 : index
    %10 = vector.load %arg4[%c0_6, %c0_7] : memref<32x256xbf16, #tpu.memory_space<vmem>>, vector<32x256xbf16>
    %cst_8 = arith.constant dense<0.000000e+00> : vector<16x256xf32>
    %11 = tpu.matmul %9, %10, %cst_8 {dimension_numbers = #tpu.dot_dimension_numbers<[1], [0], [0], [1], [0, 0, 1, 1], [], []>} : vector<16x32xbf16>, vector<32x256xbf16>, vector<16x256xf32> -> vector<16x256xf32>
    %c0_9 = arith.constant 0 : index
    %c0_10 = arith.constant 0 : index
    %12 = vector.load %arg5[%c0_9, %c0_10] : memref<1x256xf32, #tpu.memory_space<vmem>>, vector<1x256xf32>
    %13 = vector.broadcast %12 : vector<1x256xf32> to vector<16x256xf32>
    %14 = arith.addf %11, %13 : vector<16x256xf32>
    %cst_11 = arith.constant 0.000000e+00 : f32
    %15 = vector.broadcast %cst_11 : f32 to vector<16x256xf32>
    %16 = arith.maximumf %14, %15 : vector<16x256xf32>
    %17 = arith.truncf %16 : vector<16x256xf32> to vector<16x256xbf16>
    %c0_12 = arith.constant 0 : index
    %c0_13 = arith.constant 0 : index
    %18 = vector.load %arg6[%c0_12, %c0_13] : memref<256x8xbf16, #tpu.memory_space<vmem>>, vector<256x8xbf16>
    %cst_14 = arith.constant dense<0.000000e+00> : vector<16x8xf32>
    %19 = tpu.matmul %17, %18, %cst_14 {dimension_numbers = #tpu.dot_dimension_numbers<[1], [0], [0], [1], [0, 0, 1, 1], [], []>} : vector<16x256xbf16>, vector<256x8xbf16>, vector<16x8xf32> -> vector<16x8xf32>
    %c0_15 = arith.constant 0 : index
    %c0_16 = arith.constant 0 : index
    %20 = vector.load %arg7[%c0_15, %c0_16] : memref<1x8xf32, #tpu.memory_space<vmem>>, vector<1x8xf32>
    %21 = vector.broadcast %20 : vector<1x8xf32> to vector<16x8xf32>
    %22 = arith.addf %19, %21 : vector<16x8xf32>
    %c0_17 = arith.constant 0 : index
    %c0_18 = arith.constant 0 : index
    %23 = vector.load %arg8[%c0_17, %c0_18] : memref<16x8xf32, #tpu.memory_space<vmem>>, vector<16x8xf32>
    tpu.vector_store %arg8[%c0_17, %c0_18], %22 {strides = array<i32>} : memref<16x8xf32, #tpu.memory_space<vmem>>, vector<16x8xf32>,
    return
  }
  func.func @transform_0(%arg0: i32) -> (i32, i32) {
    %c0_i32 = arith.constant 0 : i32
    %c0_i32_0 = arith.constant 0 : i32
    return %arg0, %c0_i32 : i32, i32
  }
  func.func @transform_1(%arg0: i32) -> (i32, i32) {
    %c0_i32 = arith.constant 0 : i32
    %c0_i32_0 = arith.constant 0 : i32
    %c0_i32_1 = arith.constant 0 : i32
    return %c0_i32, %c0_i32_0 : i32, i32
  }
  func.func @transform_2(%arg0: i32) -> (i32, i32) {
    %c0_i32 = arith.constant 0 : i32
    %c0_i32_0 = arith.constant 0 : i32
    %c0_i32_1 = arith.constant 0 : i32
    return %c0_i32, %c0_i32_0 : i32, i32
  }
  func.func @transform_3(%arg0: i32) -> (i32, i32) {
    %c0_i32 = arith.constant 0 : i32
    %c0_i32_0 = arith.constant 0 : i32
    %c0_i32_1 = arith.constant 0 : i32
    return %c0_i32, %c0_i32_0 : i32, i32
  }
  func.func @transform_4(%arg0: i32) -> (i32, i32) {
    %c0_i32 = arith.constant 0 : i32
    %c0_i32_0 = arith.constant 0 : i32
    %c0_i32_1 = arith.constant 0 : i32
    return %c0_i32, %c0_i32_0 : i32, i32
  }
  func.func @transform_5(%arg0: i32) -> (i32, i32) {
    %c0_i32 = arith.constant 0 : i32
    %c0_i32_0 = arith.constant 0 : i32
    %c0_i32_1 = arith.constant 0 : i32
    return %c0_i32, %c0_i32_0 : i32, i32
  }
  func.func @transform_6(%arg0: i32) -> (i32, i32) {
    %c0_i32 = arith.constant 0 : i32
    %c0_i32_0 = arith.constant 0 : i32
    %c0_i32_1 = arith.constant 0 : i32
    return %c0_i32, %c0_i32_0 : i32, i32
  }
  func.func @transform_7(%arg0: i32) -> (i32, i32) {
    %c0_i32 = arith.constant 0 : i32
    %c0_i32_0 = arith.constant 0 : i32
    return %arg0, %c0_i32 : i32, i32
  }
}

</mosaic_0001>

<llo_original>
// kernel: tpu_custom_call.1
$region0: #{tpu_custom_call.1}
  #allocation0 [shape = 'u32[]', space=smem, size = 0x4, offset = 0x4, fixed_abs, tag = 'smem constant byte address 0x4 - core index']
  #allocation1 [shape = 'u32[144,128]{1,0:T(1,128)}', space=vmem, size = 0x12000, scoped, tag = 'internal scratch']
  %s0 = inlined_call_operand.vmem [shape: f32[48,128], index: 0, kind: input, shape index: {}]
  %s1 = inlined_call_operand.vmem [shape: bf16[128,32], index: 1, kind: input, shape index: {}]
  %s2 = inlined_call_operand.vmem [shape: f32[1,32], index: 2, kind: input, shape index: {}]
  %s3 = inlined_call_operand.vmem [shape: bf16[32,256], index: 3, kind: input, shape index: {}]
  %s4 = inlined_call_operand.vmem [shape: f32[1,256], index: 4, kind: input, shape index: {}]
  %s5 = inlined_call_operand.vmem [shape: bf16[256,8], index: 5, kind: input, shape index: {}]
  %s6 = inlined_call_operand.vmem [shape: f32[1,8], index: 6, kind: input, shape index: {}]
  %s7 = inlined_call_operand.vmem [shape: f32[48,8], index: 7, kind: output, shape index: {}]
  %s8 = sld [smem:[#allocation0]]
  $region61: #{tpu_custom_call.1} parent=0
    _
  %s10 = ssub.s32 1, %s8
  %s11 = scalar_select 0, %s10, %s8
  loop: start=0, step=1, limit=5
  $region2: #{tpu_custom_call.1} parent=0 // loop_pre_header
    _
  $region3: #{tpu_custom_call.1} parent=0 // loop_header
    %s13 = sphi 0, %s17
    %p14 = scmp.ge.s32.totalorder %s13, 5
    %s23 = sphi 0, %s25
    %s26 = sphi 0, %s23
    %s27 = sphi 0, %s26
    %s43 = sphi 0, %s27
    %s47 = sphi 0, %s47
    %s49 = sphi 0, %s47
    %s50 = sphi 0, %s49
    %s64 = sphi 0, %s50
    %s68 = sphi 0, %s68
    %s70 = sphi 0, %s68
    %s71 = sphi 0, %s70
    %s85 = sphi 0, %s71
    %s89 = sphi 0, %s89
    %s91 = sphi 0, %s89
    %s92 = sphi 0, %s91
    %s106 = sphi 0, %s92
    %s110 = sphi 0, %s110
    %s112 = sphi 0, %s110
    %s113 = sphi 0, %s112
    %s127 = sphi 0, %s113
    %s131 = sphi 0, %s131
    %s133 = sphi 0, %s131
    %s134 = sphi 0, %s133
    %s148 = sphi 0, %s134
    %s152 = sphi 0, %s152
    %s154 = sphi 0, %s152
    %s155 = sphi 0, %s154
    %s169 = sphi 0, %s155
    %s175 = sphi 0, %s177
    %s178 = sphi 0, %s175
    %s179 = sphi 0, %s178
    %s195 = sphi 0, %s179
  $region4: #{tpu_custom_call.1} parent=0 // loop_header_branch
    %16 = sbr.rel (%p14) target = $region8
  $region5: #{tpu_custom_call.1} parent=0 // loop_body
    %s18 = ssub.s32 %s13, 1
    %s19 = ssub.s32 %s13, 2
    %s20 = sadd.s32 %s13, 1
    %s21 = ssub.s32 %s13, %s20
    %p22 = scmp.eq.s32.totalorder %s21, 0
    %s24 = sadd.s32 %s23, 1
    %s25 = scalar_select %p22, %s23, %s24
    %p28 = pneg %p22
    %p29 = scmp.eq.s32.totalorder %s13, 2
    %p30 = por %p28, %p29
    %p31 = scmp.ne.s32.totalorder %s23, %s26
    %p32 = scmp.eq.s32.totalorder %s13, 0
    %p33 = por %p31, %p32
    %p34 = scmp.ne.s32.totalorder %s23, %s26
    %p35 = scmp.eq.s32.totalorder %s18, 2
    %p36 = por %p34, %p35
    %p37 = scmp.ne.s32.totalorder %s26, %s27
    %p38 = scmp.eq.s32.totalorder %s18, 0
    %p39 = por %p37, %p38
    %p40 = scmp.ne.s32.totalorder %s26, %s27
    %p41 = scmp.eq.s32.totalorder %s19, 2
    %p42 = por %p40, %p41
    %p44 = scmp.ne.s32.totalorder %s27, %s43
    %p45 = scmp.eq.s32.totalorder %s19, 0
    %p46 = por %p44, %p45
    %s48 = sadd.s32 %s47, 1
    %p51 = scmp.eq.s32.totalorder %s13, 2
    %p52 = scmp.ne.s32.totalorder %s47, %s49
    %p53 = scmp.eq.s32.totalorder %s13, 0
    %p54 = por %p52, %p53
    %p55 = scmp.ne.s32.totalorder %s47, %s49
    %p56 = scmp.eq.s32.totalorder %s18, 2
    %p57 = por %p55, %p56
    %p58 = scmp.ne.s32.totalorder %s49, %s50
    %p59 = scmp.eq.s32.totalorder %s18, 0
    %p60 = por %p58, %p59
    %p61 = scmp.ne.s32.totalorder %s49, %s50
    %p62 = scmp.eq.s32.totalorder %s19, 2
    %p63 = por %p61, %p62
    %p65 = scmp.ne.s32.totalorder %s50, %s64
    %p66 = scmp.eq.s32.totalorder %s19, 0
    %p67 = por %p65, %p66
    %s69 = sadd.s32 %s68, 1
    %p72 = scmp.eq.s32.totalorder %s13, 2
    %p73 = scmp.ne.s32.totalorder %s68, %s70
    %p74 = scmp.eq.s32.totalorder %s13, 0
    %p75 = por %p73, %p74
    %p76 = scmp.ne.s32.totalorder %s68, %s70
    %p77 = scmp.eq.s32.totalorder %s18, 2
    %p78 = por %p76, %p77
    %p79 = scmp.ne.s32.totalorder %s70, %s71
    %p80 = scmp.eq.s32.totalorder %s18, 0
    %p81 = por %p79, %p80
    %p82 = scmp.ne.s32.totalorder %s70, %s71
    %p83 = scmp.eq.s32.totalorder %s19, 2
    %p84 = por %p82, %p83
    %p86 = scmp.ne.s32.totalorder %s71, %s85
    %p87 = scmp.eq.s32.totalorder %s19, 0
    %p88 = por %p86, %p87
    %s90 = sadd.s32 %s89, 1
    %p93 = scmp.eq.s32.totalorder %s13, 2
    %p94 = scmp.ne.s32.totalorder %s89, %s91
    %p95 = scmp.eq.s32.totalorder %s13, 0
    %p96 = por %p94, %p95
    %p97 = scmp.ne.s32.totalorder %s89, %s91
    %p98 = scmp.eq.s32.totalorder %s18, 2
    %p99 = por %p97, %p98
    %p100 = scmp.ne.s32.totalorder %s91, %s92
    %p101 = scmp.eq.s32.totalorder %s18, 0
    %p102 = por %p100, %p101
    %p103 = scmp.ne.s32.totalorder %s91, %s92
    %p104 = scmp.eq.s32.totalorder %s19, 2
    %p105 = por %p103, %p104
    %p107 = scmp.ne.s32.totalorder %s92, %s106
    %p108 = scmp.eq.s32.totalorder %s19, 0
    %p109 = por %p107, %p108
    %s111 = sadd.s32 %s110, 1
    %p114 = scmp.eq.s32.totalorder %s13, 2
    %p115 = scmp.ne.s32.totalorder %s110, %s112
    %p116 = scmp.eq.s32.totalorder %s13, 0
    %p117 = por %p115, %p116
    %p118 = scmp.ne.s32.totalorder %s110, %s112
    %p119 = scmp.eq.s32.totalorder %s18, 2
    %p120 = por %p118, %p119
    %p121 = scmp.ne.s32.totalorder %s112, %s113
    %p122 = scmp.eq.s32.totalorder %s18, 0
    %p123 = por %p121, %p122
    %p124 = scmp.ne.s32.totalorder %s112, %s113
    %p125 = scmp.eq.s32.totalorder %s19, 2
    %p126 = por %p124, %p125
    %p128 = scmp.ne.s32.totalorder %s113, %s127
    %p129 = scmp.eq.s32.totalorder %s19, 0
    %p130 = por %p128, %p129
    %s132 = sadd.s32 %s131, 1
    %p135 = scmp.eq.s32.totalorder %s13, 2
    %p136 = scmp.ne.s32.totalorder %s131, %s133
    %p137 = scmp.eq.s32.totalorder %s13, 0
    %p138 = por %p136, %p137
    %p139 = scmp.ne.s32.totalorder %s131, %s133
    %p140 = scmp.eq.s32.totalorder %s18, 2
    %p141 = por %p139, %p140
    %p142 = scmp.ne.s32.totalorder %s133, %s134
    %p143 = scmp.eq.s32.totalorder %s18, 0
    %p144 = por %p142, %p143
    %p145 = scmp.ne.s32.totalorder %s133, %s134
    %p146 = scmp.eq.s32.totalorder %s19, 2
    %p147 = por %p145, %p146
    %p149 = scmp.ne.s32.totalorder %s134, %s148
    %p150 = scmp.eq.s32.totalorder %s19, 0
    %p151 = por %p149, %p150
    %s153 = sadd.s32 %s152, 1
    %p156 = scmp.eq.s32.totalorder %s13, 2
    %p157 = scmp.ne.s32.totalorder %s152, %s154
    %p158 = scmp.eq.s32.totalorder %s13, 0
    %p159 = por %p157, %p158
    %p160 = scmp.ne.s32.totalorder %s152, %s154
    %p161 = scmp.eq.s32.totalorder %s18, 2
    %p162 = por %p160, %p161
    %p163 = scmp.ne.s32.totalorder %s154, %s155
    %p164 = scmp.eq.s32.totalorder %s18, 0
    %p165 = por %p163, %p164
    %p166 = scmp.ne.s32.totalorder %s154, %s155
    %p167 = scmp.eq.s32.totalorder %s19, 2
    %p168 = por %p166, %p167
    %p170 = scmp.ne.s32.totalorder %s155, %s169
    %p171 = scmp.eq.s32.totalorder %s19, 0
    %p172 = por %p170, %p171
    %s173 = ssub.s32 %s13, %s20
    %p174 = scmp.eq.s32.totalorder %s173, 0
    %s176 = sadd.s32 %s175, 1
    %s177 = scalar_select %p174, %s175, %s176
    %p180 = pneg %p174
    %p181 = scmp.eq.s32.totalorder %s13, 2
    %p182 = por %p180, %p181
    %p183 = scmp.ne.s32.totalorder %s175, %s178
    %p184 = scmp.eq.s32.totalorder %s13, 0
    %p185 = por %p183, %p184
    %p186 = scmp.ne.s32.totalorder %s175, %s178
    %p187 = scmp.eq.s32.totalorder %s18, 2
    %p188 = por %p186, %p187
    %p189 = scmp.ne.s32.totalorder %s178, %s179
    %p190 = scmp.eq.s32.totalorder %s18, 0
    %p191 = por %p189, %p190
    %p192 = scmp.ne.s32.totalorder %s178, %s179
    %p193 = scmp.eq.s32.totalorder %s19, 2
    %p194 = por %p192, %p193
    %p196 = scmp.ne.s32.totalorder %s179, %s195
    %p197 = scmp.eq.s32.totalorder %s19, 0
    %p198 = por %p196, %p197
    %p199 = scmp.le.s32.totalorder 1, %s13
    %p200 = scmp.lt.s32.totalorder %s13, 4
    %p201 = pnand %p199, %p200
    %p202 = pneg %p201
    // Predicated region
    $region9: #{tpu_custom_call.1} parent=5 // pred_check
      _
    $region10: #{tpu_custom_call.1} parent=5 // pred_check_branch
      %204 = sbr.rel (%p201) target = $region12
    $region11: #{tpu_custom_call.1} parent=5 // pred_region
      %s205 = ssub.s32 %s13, 1
      // Predicated region
      $region13: #{tpu_custom_call.1} parent=11 // pred_check
        %p206 = pneg %p60
      $region14: #{tpu_custom_call.1} parent=11 // pred_check_branch
        %208 = sbr.rel (%p206) target = $region16
      $region15: #{tpu_custom_call.1} parent=11 // pred_region
        _
      $region16: #{tpu_custom_call.1} parent=11 // pred_fallthru
        _
      // Predicated region
      $region17: #{tpu_custom_call.1} parent=11 // pred_check
        %p209 = pneg %p81
      $region18: #{tpu_custom_call.1} parent=11 // pred_check_branch
        %211 = sbr.rel (%p209) target = $region20
      $region19: #{tpu_custom_call.1} parent=11 // pred_region
        _
      $region20: #{tpu_custom_call.1} parent=11 // pred_fallthru
        _
      // Predicated region
      $region21: #{tpu_custom_call.1} parent=11 // pred_check
        %p212 = pneg %p102
      $region22: #{tpu_custom_call.1} parent=11 // pred_check_branch
        %214 = sbr.rel (%p212) target = $region24
      $region23: #{tpu_custom_call.1} parent=11 // pred_region
        _
      $region24: #{tpu_custom_call.1} parent=11 // pred_fallthru
        _
      // Predicated region
      $region25: #{tpu_custom_call.1} parent=11 // pred_check
        %p215 = pneg %p123
      $region26: #{tpu_custom_call.1} parent=11 // pred_check_branch
        %217 = sbr.rel (%p215) target = $region28
      $region27: #{tpu_custom_call.1} parent=11 // pred_region
        _
      $region28: #{tpu_custom_call.1} parent=11 // pred_fallthru
        _
      // Predicated region
      $region29: #{tpu_custom_call.1} parent=11 // pred_check
        %p218 = pneg %p144
      $region30: #{tpu_custom_call.1} parent=11 // pred_check_branch
        %220 = sbr.rel (%p218) target = $region32
      $region31: #{tpu_custom_call.1} parent=11 // pred_region
        _
      $region32: #{tpu_custom_call.1} parent=11 // pred_fallthru
        _
      // Predicated region
      $region33: #{tpu_custom_call.1} parent=11 // pred_check
        %p221 = pneg %p165
      $region34: #{tpu_custom_call.1} parent=11 // pred_check_branch
        %223 = sbr.rel (%p221) target = $region36
      $region35: #{tpu_custom_call.1} parent=11 // pred_region
        _
      $region36: #{tpu_custom_call.1} parent=11 // pred_fallthru
        _
    $region12: #{tpu_custom_call.1} parent=5 // pred_fallthru
      _
    %p224 = scmp.lt.s32.totalorder %s13, 3
    // Predicated region
    $region37: #{tpu_custom_call.1} parent=5 // pred_check
      %p225 = pneg %p224
    $region38: #{tpu_custom_call.1} parent=5 // pred_check_branch
      %227 = sbr.rel (%p225) target = $region40
    $region39: #{tpu_custom_call.1} parent=5 // pred_region
      // Predicated region
      $region41: #{tpu_custom_call.1} parent=39 // pred_check
        %p228 = pneg %p33
      $region42: #{tpu_custom_call.1} parent=39 // pred_check_branch
        %230 = sbr.rel (%p228) target = $region44
      $region43: #{tpu_custom_call.1} parent=39 // pred_region
        %s231 = smul.u32 2, %s13
        %p232 = scmp.lt.s32.totalorder %s231, 5
        %s233 = scalar_select %p232, %s231, 5
        %s234 = smul.addr %s233, 8
        %s235 = scalar_lea.vmem %s0, %s234
        %s236 = smul.u32 2, %s13
      $region44: #{tpu_custom_call.1} parent=39 // pred_fallthru
        _
    $region40: #{tpu_custom_call.1} parent=5 // pred_fallthru
      _
    %p237 = scmp.le.s32.totalorder 1, %s13
    %p238 = scmp.lt.s32.totalorder %s13, 4
    %p239 = pnand %p237, %p238
    %p240 = pneg %p239
    // Predicated region
    $region45: #{tpu_custom_call.1} parent=5 // pred_check
      _
    $region46: #{tpu_custom_call.1} parent=5 // pred_check_branch
      %242 = sbr.rel (%p239) target = $region48
    $region47: #{tpu_custom_call.1} parent=5 // pred_region
      %s243 = ssub.s32 %s13, 1
      %s244 = smul.u32 2, %s18
      %p245 = scmp.lt.s32.totalorder %s244, 5
      %s246 = scalar_select %p245, %s244, 5
      %s247 = smul.addr %s246, 8
      %s248 = scalar_lea.vmem %s0, %s247
      %p249 = pneg %p39
      %p250 = pneg %p36
      %p251 = pneg %p60
      %p252 = pneg %p57
      %p253 = pneg %p81
      %p254 = pneg %p78
      %p255 = pneg %p102
      %p256 = pneg %p99
      %p257 = pneg %p123
      %p258 = pneg %p120
      %p259 = pneg %p144
      %p260 = pneg %p141
      %p261 = pneg %p165
      %p262 = pneg %p162
      %p263 = pneg %p191
      %p264 = pneg %p188
      %s265 = smul.u32 2, %s18
      %p266 = scmp.lt.s32.totalorder %s265, 5
      %s267 = scalar_select %p266, %s265, 5
      %s268 = smul.addr %s267, 8
      %s269 = scalar_lea.vmem %s7, %s268
      %s270 = smul.u32 2, %s18
      %p271 = scmp.lt.s32.totalorder %s270, 5
      %s272 = scalar_select %p271, %s270, 5
      %s273 = smul.addr %s272, 8
      %s274 = scalar_lea.vmem %s0, %s273
      %s275 = smul.u32 2, %s18
      %s276 = smul.u32 2, %s18
      %p277 = scmp.lt.s32.totalorder %s276, 5
      %s278 = scalar_select %p277, %s276, 5
      %s279 = smul.addr %s278, 8
      %s280 = scalar_lea.vmem %s7, %s279
      %s281 = smul.u32 2, %s18
      %v283 = vld [vmem:[%s274] sm:$0xff]
      %v284 = vld [vmem:[%s274 + $0x8] sm:$0xff]
      %v285 = vpack.c.bf16 %v284, %v283
      %v286 = vld [vmem:[%s1] sm:$0xf]
      %v287 = vld [vmem:[%s1 + $0x4] sm:$0xf]
      %v288 = vld [vmem:[%s1 + $0x8] sm:$0xf]
      %v289 = vld [vmem:[%s1 + $0xc] sm:$0xf]
      %v290 = vld [vmem:[%s1 + $0x10] sm:$0xf]
      %v291 = vld [vmem:[%s1 + $0x14] sm:$0xf]
      %v292 = vld [vmem:[%s1 + $0x18] sm:$0xf]
      %v293 = vld [vmem:[%s1 + $0x1c] sm:$0xf]
      %v294 = vld [vmem:[%s1 + $0x20] sm:$0xf]
      %v295 = vld [vmem:[%s1 + $0x24] sm:$0xf]
      %v296 = vld [vmem:[%s1 + $0x28] sm:$0xf]
      %v297 = vld [vmem:[%s1 + $0x2c] sm:$0xf]
      %v298 = vld [vmem:[%s1 + $0x30] sm:$0xf]
      %v299 = vld [vmem:[%s1 + $0x34] sm:$0xf]
      %v300 = vld [vmem:[%s1 + $0x38] sm:$0xf]
      %v301 = vld [vmem:[%s1 + $0x3c] sm:$0xf]
      %v302 = vld [vmem:[%s2] sm:$0x1]
      %v304 = vlaneseq
      %v305 = vshrl.u32 %v304, 7
      %v306 = vsub.s32 0, %v305
      %v307 = vrot.slane %v302, %v306
      %v325 = vunpack.c.l.b16 %v286
      %v326 = vunpack.c.l.b16 %v287
      %v327 = vunpack.c.l.b16 %v288
      %v328 = vunpack.c.l.b16 %v289
      %v329 = vunpack.c.l.b16 %v290
      %v330 = vunpack.c.l.b16 %v291
      %v331 = vunpack.c.l.b16 %v292
      %v332 = vunpack.c.l.b16 %v293
      %v333 = vunpack.c.l.b16 %v294
      %v334 = vunpack.c.l.b16 %v295
      %v335 = vunpack.c.l.b16 %v296
      %v336 = vunpack.c.l.b16 %v297
      %v337 = vunpack.c.l.b16 %v298
      %v338 = vunpack.c.l.b16 %v299
      %v339 = vunpack.c.l.b16 %v300
      %v340 = vunpack.c.l.b16 %v301
      %v341 = vpack.c.b16 %v326, %v325
      %v342 = vpack.c.b16 %v328, %v327
      %v343 = vpack.c.b16 %v330, %v329
      %v344 = vpack.c.b16 %v332, %v331
      %v345 = vpack.c.b16 %v334, %v333
      %v346 = vpack.c.b16 %v336, %v335
      %v347 = vpack.c.b16 %v338, %v337
      %v348 = vpack.c.b16 %v340, %v339
      %357 = vmatprep.subr.bf16.mxu0 0
      %358 = vmatpush1.bf16.msra.mxu0 %v341
      %359 = vmatprep.subr.bf16.mxu0 0
      %360 = vmatpush1.bf16.msra.mxu0 %v342
      %361 = vmatprep.subr.bf16.mxu0 0
      %362 = vmatpush1.bf16.msra.mxu0 %v343
      %363 = vmatprep.subr.bf16.mxu0 0
      %364 = vmatpush1.bf16.msra.mxu0 %v344
      %365 = vmatprep.subr.bf16.mxu0 0
      %366 = vmatpush1.bf16.msra.mxu0 %v345
      %367 = vmatprep.subr.bf16.mxu0 0
      %368 = vmatpush1.bf16.msra.mxu0 %v346
      %369 = vmatprep.subr.bf16.mxu0 0
      %370 = vmatpush1.bf16.msra.mxu0 %v347
      %371 = vmatprep.subr.bf16.mxu0 0
      %372 = vmatpush1.bf16.msra.mxu0 %v348
      %373 = vmatprep.subr.bf16.mxu0 0
      %374 = vmatpush1.bf16.msra.mxu0 0
      %375 = vmatprep.subr.bf16.mxu0 0
      %376 = vmatpush1.bf16.msra.mxu0 0
      %377 = vmatprep.subr.bf16.mxu0 0
      %378 = vmatpush1.bf16.msra.mxu0 0
      %379 = vmatprep.subr.bf16.mxu0 0
      %380 = vmatpush1.bf16.msra.mxu0 0
      %381 = vmatprep.subr.bf16.mxu0 0
      %382 = vmatpush1.bf16.msra.mxu0 0
      %383 = vmatprep.subr.bf16.mxu0 0
      %384 = vmatpush1.bf16.msra.mxu0 0
      %385 = vmatprep.subr.bf16.mxu0 0
      %386 = vmatpush1.bf16.msra.mxu0 0
      %387 = vmatprep.subr.bf16.mxu0 0
      %388 = vmatpush1.bf16.msra.mxu0 0
      %389 = vmatprep.mubr.bf16.mxu0 0
      %390 = vmatmul.mubr.bf16.gmra.mrb[0].mxu0 %v285
      %v391 = vpop.f32.mrb[0].mxu0
      %v392 = vadd.f32 %v307, %v391
      %v393 = vpop.f32.mrb[0].mxu0
      %v394 = vpop.f32.mrb[0].mxu0
      %v395 = vadd.f32 %v307, %v394
      %v396 = vpop.f32.mrb[0].mxu0
      %397 = vdwg.mxu0
      %v398 = vmax.f32 %v392, 0.0
      %v399 = vmax.f32 %v395, 0.0
      %v400 = vpack.c.bf16 %v399, %v398
      %v401 = vld [vmem:[%s3] sm:$0xff]
      %v402 = vld [vmem:[%s3 + $0x8] sm:$0xff]
      %v403 = vld [vmem:[%s3 + $0x10] sm:$0xff]
      %v404 = vld [vmem:[%s3 + $0x18] sm:$0xff]
      %v405 = vld [vmem:[%s4] sm:$0x3]
      %v407 = vlaneseq
      %v408 = vshrl.u32 %v407, 7
      %v409 = vsub.s32 0, %v408
      %v410 = vrot.slane %v405, %v409
      %v411 = vlaneseq
      %v412 = vshrl.u32 %v411, 7
      %v413 = vsub.s32 1, %v412
      %v414 = vrot.slane %v405, %v413
      %v421 = vunpack.c.l.b16 %v401
      %v422 = vunpack.c.h.b16 %v401
      %v423 = vunpack.c.l.b16 %v402
      %v424 = vunpack.c.h.b16 %v402
      %v425 = vunpack.c.l.b16 %v403
      %v426 = vunpack.c.h.b16 %v403
      %v427 = vunpack.c.l.b16 %v404
      %v428 = vunpack.c.h.b16 %v404
      %v429 = vpack.c.b16 %v423, %v421
      %v430 = vpack.c.b16 %v424, %v422
      %v431 = vpack.c.b16 %v427, %v425
      %v432 = vpack.c.b16 %v428, %v426
      %vm437 = vcmask 261120
      %v439 = vsel %vm437, %v400, 0
      %441 = vmatprep.subr.bf16.mxu0 %v430
      %442 = vmatpush1.bf16.msra.mxu0 %v429
      %443 = vmatprep.subr.bf16.mxu0 %v432
      %444 = vmatpush1.bf16.msra.mxu0 %v431
      %445 = vmatprep.subr.bf16.mxu0 0
      %446 = vmatpush1.bf16.msra.mxu0 0
      %447 = vmatprep.subr.bf16.mxu0 0
      %448 = vmatpush1.bf16.msra.mxu0 0
      %449 = vmatprep.subr.bf16.mxu0 0
      %450 = vmatpush1.bf16.msra.mxu0 0
      %451 = vmatprep.subr.bf16.mxu0 0
      %452 = vmatpush1.bf16.msra.mxu0 0
      %453 = vmatprep.subr.bf16.mxu0 0
      %454 = vmatpush1.bf16.msra.mxu0 0
      %455 = vmatprep.subr.bf16.mxu0 0
      %456 = vmatpush1.bf16.msra.mxu0 0
      %457 = vmatprep.subr.bf16.mxu0 0
      %458 = vmatpush1.bf16.msra.mxu0 0
      %459 = vmatprep.subr.bf16.mxu0 0
      %460 = vmatpush1.bf16.msra.mxu0 0
      %461 = vmatprep.subr.bf16.mxu0 0
      %462 = vmatpush1.bf16.msra.mxu0 0
      %463 = vmatprep.subr.bf16.mxu0 0
      %464 = vmatpush1.bf16.msra.mxu0 0
      %465 = vmatprep.subr.bf16.mxu0 0
      %466 = vmatpush1.bf16.msra.mxu0 0
      %467 = vmatprep.subr.bf16.mxu0 0
      %468 = vmatpush1.bf16.msra.mxu0 0
      %469 = vmatprep.subr.bf16.mxu0 0
      %470 = vmatpush1.bf16.msra.mxu0 0
      %471 = vmatprep.subr.bf16.mxu0 0
      %472 = vmatpush1.bf16.msra.mxu0 0
      %473 = vmatprep.mubr.bf16.mxu0 0
      %474 = vmatmul.mubr.bf16.gmra.mrb[0].mxu0 %v439
      %v475 = vpop.f32.mrb[0].mxu0
      %v476 = vadd.f32 %v410, %v475
      %v477 = vpop.f32.mrb[0].mxu0
      %v478 = vadd.f32 %v414, %v477
      %v479 = vpop.f32.mrb[0].mxu0
      %v480 = vadd.f32 %v410, %v479
      %v481 = vpop.f32.mrb[0].mxu0
      %v482 = vadd.f32 %v414, %v481
      %483 = vdwg.mxu0
      %v484 = vmax.f32 %v476, 0.0
      %v485 = vmax.f32 %v478, 0.0
      %v486 = vmax.f32 %v480, 0.0
      %v487 = vmax.f32 %v482, 0.0
      %v488 = vpack.c.bf16 %v486, %v484
      %v489 = vpack.c.bf16 %v487, %v485
      %v490 = vld [vmem:[%s5] sm:$0xf]
      %v491 = vld [vmem:[%s5 + $0x4] sm:$0xf]
      %v492 = vld [vmem:[%s5 + $0x8] sm:$0xf]
      %v493 = vld [vmem:[%s5 + $0xc] sm:$0xf]
      %v494 = vld [vmem:[%s5 + $0x10] sm:$0xf]
      %v495 = vld [vmem:[%s5 + $0x14] sm:$0xf]
      %v496 = vld [vmem:[%s5 + $0x18] sm:$0xf]
      %v497 = vld [vmem:[%s5 + $0x1c] sm:$0xf]
      %v498 = vld [vmem:[%s5 + $0x20] sm:$0xf]
      %v499 = vld [vmem:[%s5 + $0x24] sm:$0xf]
      %v500 = vld [vmem:[%s5 + $0x28] sm:$0xf]
      %v501 = vld [vmem:[%s5 + $0x2c] sm:$0xf]
      %v502 = vld [vmem:[%s5 + $0x30] sm:$0xf]
      %v503 = vld [vmem:[%s5 + $0x34] sm:$0xf]
      %v504 = vld [vmem:[%s5 + $0x38] sm:$0xf]
      %v505 = vld [vmem:[%s5 + $0x3c] sm:$0xf]
      %v506 = vld [vmem:[%s5 + $0x40] sm:$0xf]
      %v507 = vld [vmem:[%s5 + $0x44] sm:$0xf]
      %v508 = vld [vmem:[%s5 + $0x48] sm:$0xf]
      %v509 = vld [vmem:[%s5 + $0x4c] sm:$0xf]
      %v510 = vld [vmem:[%s5 + $0x50] sm:$0xf]
      %v511 = vld [vmem:[%s5 + $0x54] sm:$0xf]
      %v512 = vld [vmem:[%s5 + $0x58] sm:$0xf]
      %v513 = vld [vmem:[%s5 + $0x5c] sm:$0xf]
      %v514 = vld [vmem:[%s5 + $0x60] sm:$0xf]
      %v515 = vld [vmem:[%s5 + $0x64] sm:$0xf]
      %v516 = vld [vmem:[%s5 + $0x68] sm:$0xf]
      %v517 = vld [vmem:[%s5 + $0x6c] sm:$0xf]
      %v518 = vld [vmem:[%s5 + $0x70] sm:$0xf]
      %v519 = vld [vmem:[%s5 + $0x74] sm:$0xf]
      %v520 = vld [vmem:[%s5 + $0x78] sm:$0xf]
      %v521 = vld [vmem:[%s5 + $0x7c] sm:$0xf]
      %v522 = vld [vmem:[%s6] sm:$0x1]
      %v524 = vlaneseq
      %v525 = vshrl.u32 %v524, 7
      %v526 = vsub.s32 0, %v525
      %v527 = vrot.slane %v522, %v526
      %v561 = vunpack.c.l.b16 %v490
      %v562 = vunpack.c.l.b16 %v491
      %v563 = vunpack.c.l.b16 %v492
      %v564 = vunpack.c.l.b16 %v493
      %v565 = vunpack.c.l.b16 %v494
      %v566 = vunpack.c.l.b16 %v495
      %v567 = vunpack.c.l.b16 %v496
      %v568 = vunpack.c.l.b16 %v497
      %v569 = vunpack.c.l.b16 %v498
      %v570 = vunpack.c.l.b16 %v499
      %v571 = vunpack.c.l.b16 %v500
      %v572 = vunpack.c.l.b16 %v501
      %v573 = vunpack.c.l.b16 %v502
      %v574 = vunpack.c.l.b16 %v503
      %v575 = vunpack.c.l.b16 %v504
      %v576 = vunpack.c.l.b16 %v505
      %v577 = vunpack.c.l.b16 %v506
      %v578 = vunpack.c.l.b16 %v507
      %v579 = vunpack.c.l.b16 %v508
      %v580 = vunpack.c.l.b16 %v509
      %v581 = vunpack.c.l.b16 %v510
      %v582 = vunpack.c.l.b16 %v511
      %v583 = vunpack.c.l.b16 %v512
      %v584 = vunpack.c.l.b16 %v513
      %v585 = vunpack.c.l.b16 %v514
      %v586 = vunpack.c.l.b16 %v515
      %v587 = vunpack.c.l.b16 %v516
      %v588 = vunpack.c.l.b16 %v517
      %v589 = vunpack.c.l.b16 %v518
      %v590 = vunpack.c.l.b16 %v519
      %v591 = vunpack.c.l.b16 %v520
      %v592 = vunpack.c.l.b16 %v521
      %v593 = vpack.c.b16 %v562, %v561
      %v594 = vpack.c.b16 %v564, %v563
      %v595 = vpack.c.b16 %v566, %v565
      %v596 = vpack.c.b16 %v568, %v567
      %v597 = vpack.c.b16 %v570, %v569
      %v598 = vpack.c.b16 %v572, %v571
      %v599 = vpack.c.b16 %v574, %v573
      %v600 = vpack.c.b16 %v576, %v575
      %v601 = vpack.c.b16 %v578, %v577
      %v602 = vpack.c.b16 %v580, %v579
      %v603 = vpack.c.b16 %v582, %v581
      %v604 = vpack.c.b16 %v584, %v583
      %v605 = vpack.c.b16 %v586, %v585
      %v606 = vpack.c.b16 %v588, %v587
      %v607 = vpack.c.b16 %v590, %v589
      %v608 = vpack.c.b16 %v592, %v591
      %625 = vmatprep.subr.bf16.mxu0 0
      %626 = vmatpush1.bf16.msra.mxu0 %v593
      %627 = vmatprep.subr.bf16.mxu0 0
      %628 = vmatpush1.bf16.msra.mxu0 %v594
      %629 = vmatprep.subr.bf16.mxu0 0
      %630 = vmatpush1.bf16.msra.mxu0 %v595
      %631 = vmatprep.subr.bf16.mxu0 0
      %632 = vmatpush1.bf16.msra.mxu0 %v596
      %633 = vmatprep.subr.bf16.mxu0 0
      %634 = vmatpush1.bf16.msra.mxu0 %v597
      %635 = vmatprep.subr.bf16.mxu0 0
      %636 = vmatpush1.bf16.msra.mxu0 %v598
      %637 = vmatprep.subr.bf16.mxu0 0
      %638 = vmatpush1.bf16.msra.mxu0 %v599
      %639 = vmatprep.subr.bf16.mxu0 0
      %640 = vmatpush1.bf16.msra.mxu0 %v600
      %641 = vmatprep.subr.bf16.mxu0 0
      %642 = vmatpush1.bf16.msra.mxu0 %v601
      %643 = vmatprep.subr.bf16.mxu0 0
      %644 = vmatpush1.bf16.msra.mxu0 %v602
      %645 = vmatprep.subr.bf16.mxu0 0
      %646 = vmatpush1.bf16.msra.mxu0 %v603
      %647 = vmatprep.subr.bf16.mxu0 0
      %648 = vmatpush1.bf16.msra.mxu0 %v604
      %649 = vmatprep.subr.bf16.mxu0 0
      %650 = vmatpush1.bf16.msra.mxu0 %v605
      %651 = vmatprep.subr.bf16.mxu0 0
      %652 = vmatpush1.bf16.msra.mxu0 %v606
      %653 = vmatprep.subr.bf16.mxu0 0
      %654 = vmatpush1.bf16.msra.mxu0 %v607
      %655 = vmatprep.subr.bf16.mxu0 0
      %656 = vmatpush1.bf16.msra.mxu0 %v608
      %657 = vmatprep.mubr.bf16.mxu0 %v489
      %658 = vmatmul.mubr.bf16.gmra.mrb[0].mxu0 %v488
      %v659 = vpop.f32.mrb[0].mxu0
      %v660 = vadd.f32 %v527, %v659
      %v661 = vpop.f32.mrb[0].mxu0
      %v662 = vpop.f32.mrb[0].mxu0
      %v663 = vadd.f32 %v527, %v662
      %v664 = vpop.f32.mrb[0].mxu0
      %665 = vdwg.mxu0
      %vm666 = vcmask 64512
      %667 = vst.msk [vmem:[%s280] sm:$0xff] %vm666, %v660
      %668 = vst.msk [vmem:[%s280 + $0x8] sm:$0xff] %vm666, %v663
      %s669 = smul.u32 2, %s18
      %p670 = scmp.lt.s32.totalorder %s669, 5
      %s671 = scalar_select %p670, %s669, 5
      %s672 = smul.addr %s671, 8
      %s673 = scalar_lea.vmem %s7, %s672
      // Predicated region
      $region49: #{tpu_custom_call.1} parent=47 // pred_check
        %p674 = pneg %p188
      $region50: #{tpu_custom_call.1} parent=47 // pred_check_branch
        %676 = sbr.rel (%p674) target = $region52
      $region51: #{tpu_custom_call.1} parent=47 // pred_region
        %s677 = smul.u32 2, %s18
      $region52: #{tpu_custom_call.1} parent=47 // pred_fallthru
        _
    $region48: #{tpu_custom_call.1} parent=5 // pred_fallthru
      _
    %p678 = scmp.le.s32.totalorder 2, %s13
    // Predicated region
    $region53: #{tpu_custom_call.1} parent=5 // pred_check
      %p679 = pneg %p678
    $region54: #{tpu_custom_call.1} parent=5 // pred_check_branch
      %681 = sbr.rel (%p679) target = $region56
    $region55: #{tpu_custom_call.1} parent=5 // pred_region
      %s682 = ssub.s32 %s13, 2
      // Predicated region
      $region57: #{tpu_custom_call.1} parent=55 // pred_check
        %p683 = pneg %p194
      $region58: #{tpu_custom_call.1} parent=55 // pred_check_branch
        %685 = sbr.rel (%p683) target = $region60
      $region59: #{tpu_custom_call.1} parent=55 // pred_region
        %s686 = smul.u32 2, %s19
        %p687 = scmp.lt.s32.totalorder %s686, 5
        %s688 = scalar_select %p687, %s686, 5
        %s689 = smul.addr %s688, 8
        %s690 = scalar_lea.vmem %s7, %s689
      $region60: #{tpu_custom_call.1} parent=55 // pred_fallthru
        _
    $region56: #{tpu_custom_call.1} parent=5 // pred_fallthru
      _
  $region6: #{tpu_custom_call.1} parent=0 // loop_footer
    %s17 = sadd.s32 1, %s13
  $region7: #{tpu_custom_call.1} parent=0 // loop_footer_branch
    %12 = sbr.rel target = $region3
  $region8: #{tpu_custom_call.1} parent=0 // loop_exit
    _

</llo_original>
